<compile_context>
chip_gen: v7x
topology: tpu7x:2x2x1
jax: 0.10.0
libtpu: 0.0.40
codegen_flags: <defaults>
</compile_context>

<pallas_src>
import functools
import math

import jax
import jax.numpy as jnp
from jax.experimental import pallas as pl
from jax.experimental.pallas import tpu as pltpu

LANE = 128
WIDE = 8 * LANE                       # 1024-wide lane-dense slab
_MIB = 1024 * 1024
VMEM_LIMIT_BYTES = 32 * _MIB          # explicit scoped-VMEM limit, safe on v5e/v6e/v7x
SINGLE_BLOCK_BYTES = 1 * _MIB         # below this, one full-array block is fine


def _target_block_bytes():
    """Per-buffer block-size budget, tuned per chip generation.

    v7x (64 MiB VMEM/TC, ~3.2 TB/s HBM): bigger blocks amortize the ~0.35 us
    fixed per-grid-step cost.  v5e/v6e: 4 MiB blocks; 2 in + 2 out buffers
    (double-buffered) = 16 MiB, under the explicit 32 MiB limit above.
    """
    try:
        info = pltpu.get_tpu_info()
        vmem = getattr(info, "vmem_capacity_bytes", None)
        if vmem is not None and vmem <= 64 * _MIB:   # v7x-class TensorCore
            return 6 * _MIB
    except Exception:
        pass
    return 4 * _MIB


def _choose_row_tiling(rows, width, itemsize, target_block_bytes):
    """Row-tile size for the (rows, width) slab.

    <= 1 MiB: single full-array block.  Larger: >= 4 blocks (even count, so
    v7x's two TensorCores both get row tiles and pipelining has work to
    overlap), each capped at target_block_bytes; tile_rows is a multiple of
    16 sublanes (covers both f32 (8,128) and bf16 (16,128) packing).
    """
    bytes_per_row = width * itemsize
    total_bytes = rows * bytes_per_row
    if total_bytes <= SINGLE_BLOCK_BYTES:
        return rows, 1
    nblocks = max(4, pl.cdiv(total_bytes, target_block_bytes))
    nblocks += nblocks % 2                           # even block count (v7x 2 TCs)
    tile_rows = ((pl.cdiv(rows, nblocks) + 15) // 16) * 16
    cap = max(16, (target_block_bytes // bytes_per_row) // 16 * 16)
    tile_rows = max(16, min(tile_rows, cap))
    if tile_rows >= rows:
        return rows, 1
    return tile_rows, pl.cdiv(rows, tile_rows)


def _choose_1d_tiling(n, itemsize, target_block_bytes):
    """Block length for the unpadded 1-D (ragged-size) path; multiple of 1024."""
    total_bytes = n * itemsize
    if total_bytes <= SINGLE_BLOCK_BYTES:
        return n, 1                                  # full-dim block (always legal)
    cap = max(WIDE, (target_block_bytes // itemsize) // WIDE * WIDE)
    nblocks = max(4, pl.cdiv(total_bytes, target_block_bytes))
    nblocks += nblocks % 2
    block = ((pl.cdiv(n, nblocks) + WIDE - 1) // WIDE) * WIDE
    block = max(WIDE, min(block, cap))
    if block >= n:
        return n, 1
    return block, pl.cdiv(n, block)


def _fake_quant_kernel(x_ref, o_ref, *, scale, inv_scale, quant_min, quant_max,
                       compute_dtype):
    """Elementwise fake quantize/dequantize on one VMEM tile.

    All quantizer parameters are compile-time constants.  compute_dtype is
    bf16 for bf16 inputs with num_bits <= 8 (bit-exact vs f32 for power-of-2
    scales), f32 otherwise.  For ragged final blocks the unmasked input tail
    holds garbage, but the op is elementwise and the writeback is masked.
    """
    x = x_ref[...].astype(compute_dtype)
    if inv_scale is not None:
        q = jnp.round(x * inv_scale)      # exact for power-of-2 scales (nndct invariant)
    else:
        q = jnp.round(x / scale)
    # TODO(synk): jnp.round is half-to-even (same as torch.round); some nndct
    # fix-neuron variants use round-half-away-from-zero (DPU rounding).
    q = jnp.clip(q, quant_min, quant_max)
    o_ref[...] = (q * scale).astype(o_ref.dtype)


def fake_quantize(x, *, num_bits=8, scale=2.0 ** -5, quant_enabled=True):
    """JAX wrapper reproducing FakeQuantizer forward semantics.

    num_bits -> domain = 2^(num_bits-1); quant_min = -domain, quant_max = domain-1
    scale    -> power-of-2 scale (synthetic; the torch base class defers scale
                to its derivatives).
    """
    # TODO(synk): the torch base class forward() raises NotImplementedError;
    # this implements the documented fake-quant formula used by its derivatives.
    if not quant_enabled:
        return x                                     # identity: no launch, no HBM pass
    if x.size == 0:
        return x

    orig_shape = x.shape
    dtype = x.dtype
    itemsize = dtype.itemsize

    domain = float(2 ** (num_bits - 1))
    quant_min = -domain
    quant_max = domain - 1.0
    mant, _ = math.frexp(float(scale))
    is_pow2 = (mant == 0.5)                          # nndct uses power-of-2 scaling
    inv_scale = 1.0 / float(scale) if is_pow2 else None

    # bf16-native compute is bit-exact only when |q| <= 2^7 fits the bf16
    # mantissa and the scale is a power of two; otherwise compute in f32.
    if dtype == jnp.bfloat16 and num_bits <= 8 and is_pow2:
        compute_dtype = jnp.bfloat16
    else:
        compute_dtype = jnp.float32

    kernel = functools.partial(
        _fake_quant_kernel,
        scale=float(scale),
        inv_scale=inv_scale,
        quant_min=quant_min,
        quant_max=quant_max,
        compute_dtype=compute_dtype,
    )

    flat = x.reshape(-1)                             # pure reshape: no copy
    n = flat.shape[0]
    target = _target_block_bytes()
    cparams = pltpu.CompilerParams(
        dimension_semantics=("parallel",),           # shard row blocks across v7x's 2 TCs
        vmem_limit_bytes=VMEM_LIMIT_BYTES,
    )
    cost = pl.CostEstimate(flops=4 * n, transcendentals=0,
                           bytes_accessed=2 * n * itemsize)

    # Lane-dense 2-D slab path: free reshape when the flat size divides a
    # multiple-of-128 width.  No pad, no slice.
    width = next((w for w in (WIDE, 512, 256, LANE) if n % w == 0), None)

    if width is not None:
        x2d = flat.reshape(-1, width)
        rows = x2d.shape[0]
        tile_rows, grid_len = _choose_row_tiling(rows, width, itemsize, target)
        out2d = pl.pallas_call(
            kernel,
            out_shape=jax.ShapeDtypeStruct((rows, width), dtype),
            grid=(grid_len,),
            in_specs=[pl.BlockSpec((tile_rows, width), lambda i: (i, 0))],
            out_specs=pl.BlockSpec((tile_rows, width), lambda i: (i, 0)),
            compiler_params=cparams,
            cost_estimate=cost,
        )(x2d)
        return out2d.reshape(orig_shape)

    # Ragged path: run directly on the unpadded 1-D flat array.  The final
    # block is ragged; Pallas masks its writeback, so no jnp.pad and no output
    # slice (no extra HBM passes).
    block, grid_len = _choose_1d_tiling(n, itemsize, target)
    out = pl.pallas_call(
        kernel,
        out_shape=jax.ShapeDtypeStruct((n,), dtype),
        grid=(grid_len,),
        in_specs=[pl.BlockSpec((block,), lambda i: (i,))],
        out_specs=pl.BlockSpec((block,), lambda i: (i,)),
        compiler_params=cparams,
        cost_estimate=cost,
    )(flat)
    return out.reshape(orig_shape)


def fake_quantize_reference(x, *, num_bits=8, scale=2.0 ** -5, quant_enabled=True):
    """Pure-JAX reference for correctness check (compute in f32, cast back)."""
    if not quant_enabled:
        return x
    domain = float(2 ** (num_bits - 1))
    xf = x.astype(jnp.float32)
    q = jnp.clip(jnp.round(xf / scale), -domain, domain - 1.0)
    return (q * scale).astype(x.dtype)


if __name__ == "__main__":
    # Deterministic synthetic setup: num_bits=8, power-of-2 scale 2^-5.
    key = jax.random.PRNGKey(0)

    # 1) Small NCHW f32 activation (module-typical shape); single-block 2-D path.
    x = jax.random.normal(key, (2, 4, 16, 16), dtype=jnp.float32)
    y = jax.block_until_ready(fake_quantize(x, num_bits=8, scale=2.0 ** -5))
    y_ref = fake_quantize_reference(x, num_bits=8, scale=2.0 ** -5)
    assert y.shape == x.shape and y.dtype == x.dtype
    assert jnp.allclose(y, y_ref, atol=1e-6), "f32 mismatch vs reference"

    # 2) Ragged flattened size (15345 elems): unpadded 1-D path, no pad/slice.
    x_rag = jax.random.normal(jax.random.PRNGKey(1), (3, 5, 31, 33), dtype=jnp.float32)
    y_rag = jax.block_until_ready(fake_quantize(x_rag))
    assert jnp.allclose(y_rag, fake_quantize_reference(x_rag), atol=1e-6), "ragged mismatch"

    # 3) Larger input (4 MiB flat): multi-block pipelined path (grid of row tiles).
    x_big = jax.random.normal(jax.random.PRNGKey(2), (8, 32, 64, 64), dtype=jnp.float32)
    y_big = jax.block_until_ready(fake_quantize(x_big))
    assert jnp.allclose(y_big, fake_quantize_reference(x_big), atol=1e-6), "tiled mismatch"

    # 4) bf16 input: native bf16 compute (exact for num_bits<=8, power-of-2 scale).
    x_bf = jax.random.normal(jax.random.PRNGKey(3), (2, 4, 16, 16), dtype=jnp.bfloat16)
    y_bf = jax.block_until_ready(fake_quantize(x_bf))
    assert y_bf.dtype == jnp.bfloat16
    assert jnp.allclose(
        y_bf.astype(jnp.float32),
        fake_quantize_reference(x_bf).astype(jnp.float32),
        atol=1e-6,
    ), "bf16 mismatch"

    # 5) quant_enabled=False path: identity, no kernel launch.
    y_off = fake_quantize(x, quant_enabled=False)
    assert y_off is x, "disabled path must be identity"

    print("KERNEL_OK")
</pallas_src>

<mosaic_0001>
module attributes {stable_mosaic.version = 11 : i64} {
  func.func @_fake_quant_kernel(%arg0: i32, %arg1: memref<2x1024xf32, #tpu.memory_space<vmem>>, %arg2: memref<2x1024xf32, #tpu.memory_space<vmem>>) attributes {dimension_semantics = [#tpu.dimension_semantics<parallel>], iteration_bounds = array<i64: 1>, scalar_prefetch = 0 : i64, scratch_operands = 0 : i64, tpu.core_type = #tpu.core_type<tc>, window_params = [{transform_indices = @transform_0, window_bounds = array<i64: 2, 1024>}, {transform_indices = @transform_1, window_bounds = array<i64: 2, 1024>}]} {
    %c0 = arith.constant 0 : index
    %c0_0 = arith.constant 0 : index
    %0 = vector.load %arg1[%c0, %c0_0] : memref<2x1024xf32, #tpu.memory_space<vmem>>, vector<2x1024xf32>
    %cst = arith.constant 3.200000e+01 : f32
    %1 = vector.broadcast %cst : f32 to vector<2x1024xf32>
    %2 = arith.mulf %0, %1 : vector<2x1024xf32>
    %3 = math.roundeven %2 : vector<2x1024xf32>
    %cst_1 = arith.constant -1.280000e+02 : f32
    %cst_2 = arith.constant 1.270000e+02 : f32
    %4 = vector.broadcast %cst_1 : f32 to vector<2x1024xf32>
    %5 = arith.maximumf %4, %3 : vector<2x1024xf32>
    %6 = vector.broadcast %cst_2 : f32 to vector<2x1024xf32>
    %7 = arith.minimumf %6, %5 : vector<2x1024xf32>
    %cst_3 = arith.constant 3.125000e-02 : f32
    %8 = vector.broadcast %cst_3 : f32 to vector<2x1024xf32>
    %9 = arith.mulf %7, %8 : vector<2x1024xf32>
    %c0_4 = arith.constant 0 : index
    %c0_5 = arith.constant 0 : index
    %10 = vector.load %arg2[%c0_4, %c0_5] : memref<2x1024xf32, #tpu.memory_space<vmem>>, vector<2x1024xf32>
    tpu.vector_store %arg2[%c0_4, %c0_5], %9 {strides = array<i32>} : memref<2x1024xf32, #tpu.memory_space<vmem>>, vector<2x1024xf32>,
    return
  }
  func.func @transform_0(%arg0: i32) -> (i32, i32) {
    %c0_i32 = arith.constant 0 : i32
    %c0_i32_0 = arith.constant 0 : i32
    return %arg0, %c0_i32 : i32, i32
  }
  func.func @transform_1(%arg0: i32) -> (i32, i32) {
    %c0_i32 = arith.constant 0 : i32
    %c0_i32_0 = arith.constant 0 : i32
    return %arg0, %c0_i32 : i32, i32
  }
}

</mosaic_0001>

<llo_original>
// kernel: tpu_custom_call.1
$region0: #{tpu_custom_call.1}
  #allocation0 [shape = 'u32[]', space=smem, size = 0x4, offset = 0x4, fixed_abs, tag = 'smem constant byte address 0x4 - core index']
  #allocation1 [shape = 'u32[144,128]{1,0:T(1,128)}', space=vmem, size = 0x12000, scoped, tag = 'internal scratch']
  %s0 = inlined_call_operand.hbm [shape: f32[2,1024], index: 0, kind: input, shape index: {}]
  %s1 = inlined_call_operand.hbm [shape: f32[2,1024], index: 1, kind: output, shape index: {}]
  %s2 = sld [smem:[#allocation0]]
  $region18: #{tpu_custom_call.1} parent=0
    _
  %s4 = ssub.s32 1, %s2
  %s5 = scalar_select 0, %s4, %s2
  $region1: #{tpu_custom_call.1} parent=0
    #allocation2 [shape = 'u8[8192]{0}', space=vmem, size = 0x2000, scoped, tag = 'input window, operand 0, single buffered']
    #allocation3 [shape = 's32[1]{0}', space=sflag, size = 0x4, scoped, tag = 'scoped memory for tpu_custom_call.1']
    #allocation4 [shape = 's32[1]{0}', space=sflag, size = 0x4, scoped, tag = 'scoped memory for tpu_custom_call.1']
    #allocation5 [shape = 'u8[8192]{0}', space=vmem, size = 0x2000, scoped, tag = 'output window, operand 0, single buffered']
    %6 = vsyncpa [#allocation3], 0
    %7 = vsyncpa [#allocation4], 0
    // Predicated region
    $region2: #{tpu_custom_call.1} parent=1 // pred_check
      _
    $region3: #{tpu_custom_call.1} parent=1 // pred_check_branch
      %9 = sbr.rel (0) target = $region5
    $region4: #{tpu_custom_call.1} parent=1 // pred_region
      %s11 = ssub.s32 256, 256
      %12 = vsyncadd [#allocation3], %s11
      %s14 = sshll.u32 [#allocation2], 4
      %s15 = int_to_ptr.vmem [resolvable:$true] %s14
      %17 = dma.hbm_to_vmem [thread:$0]  %s0, 256, %s15, [#allocation3]
    $region5: #{tpu_custom_call.1} parent=1 // pred_fallthru
      _
    // Predicated region
    $region6: #{tpu_custom_call.1} parent=1 // pred_check
      _
    $region7: #{tpu_custom_call.1} parent=1 // pred_check_branch
      %19 = sbr.rel (0) target = $region9
    $region8: #{tpu_custom_call.1} parent=1 // pred_region
      %20 = dma.done [#allocation3], 256
    $region9: #{tpu_custom_call.1} parent=1 // pred_fallthru
      _
    %v21 = vld [vmem:[#allocation2] sm:$0xff]
    %v22 = vld [vmem:[#allocation2 + $0x8] sm:$0xff]
    %v23 = vmul.f32 %v21, 32.0
    %v24 = vmul.f32 %v22, 32.0
    %v25 = vround.ne.pseudo %v23
    %v26 = vround.ne.pseudo %v24
    %v27 = vmax.f32 %v25, -128.0
    %v28 = vmax.f32 %v26, -128.0
    %v29 = vmin.f32 %v27, 127.0
    %v30 = vmin.f32 %v28, 127.0
    %v31 = vmul.f32 %v29, 0.03125
    %v32 = vmul.f32 %v30, 0.03125
    %33 = vst [vmem:[#allocation5] sm:$0xff] %v31
    %34 = vst [vmem:[#allocation5 + $0x8] sm:$0xff] %v32
    // Predicated region
    $region10: #{tpu_custom_call.1} parent=1 // pred_check
      _
    $region11: #{tpu_custom_call.1} parent=1 // pred_check_branch
      %36 = sbr.rel (0) target = $region13
    $region12: #{tpu_custom_call.1} parent=1 // pred_region
      %s38 = ssub.s32 256, 256
      %39 = vsyncadd [#allocation4], %s38
      %s41 = sshll.u32 [#allocation5], 4
      %s42 = int_to_ptr.vmem [resolvable:$true] %s41
      %44 = dma.vmem_to_hbm [thread:$0]  %s42, 256, %s1, [#allocation4]
    $region13: #{tpu_custom_call.1} parent=1 // pred_fallthru
      _
    // Predicated region
    $region14: #{tpu_custom_call.1} parent=1 // pred_check
      _
    $region15: #{tpu_custom_call.1} parent=1 // pred_check_branch
      %46 = sbr.rel (0) target = $region17
    $region16: #{tpu_custom_call.1} parent=1 // pred_region
      %47 = dma.done [#allocation4], 256
    $region17: #{tpu_custom_call.1} parent=1 // pred_fallthru
      _
    %48 = vsyncpa [#allocation3], 1
    %49 = vsyncpa [#allocation4], 1

</llo_original>
